<compile_context>
chip_gen: v5e
topology: v5e:2x2
jax: 0.10.0
libtpu: 0.0.40
codegen_flags: <defaults>
</compile_context>

<pallas_src>
import functools

import jax
import jax.numpy as jnp
from jax.experimental import pallas as pl
from jax.experimental.pallas import tpu as pltpu


def _round_up(x, m):
    return (x + m - 1) // m * m


def _cdiv(a, b):
    return -(-a // b)


def _detect_core_split():
    """Best-effort #TensorCores per chip (2 on v7x, 1 on v5e/v6e).  Never raises."""
    try:
        info = pltpu.get_tpu_info()
        for attr in ("num_tensorcores", "tensorcores_per_chip", "num_cores_per_chip"):
            v = getattr(info, attr, None)
            if isinstance(v, int) and v >= 1:
                return max(1, min(2, v))
    except Exception:
        pass
    return 1


# ---------------------------------------------------------------------------
# Pass 1: per-graph segment sums (resident per-core [b_pad, H] accumulators).
# ---------------------------------------------------------------------------
def _segment_sum_kernel(bid_ref, hv_ref, sums_ref, *, b_pad, tile_n, tiles_per_core,
                        n_rows):
    c = pl.program_id(0)          # core split ("parallel")
    i = pl.program_id(1)          # node-tile reduction ("arbitrary")

    @pl.when(i == 0)
    def _init():
        sums_ref[...] = jnp.zeros_like(sums_ref)

    hv = hv_ref[...].astype(jnp.float32)                 # [tile_n, H]
    bid = bid_ref[...]                                   # [1, tile_n] (sentinel in pad)

    # Zero-mask the ragged node tail: uninitialized tail rows times a 0 one-hot entry
    # would otherwise poison every segment row (0 * NaN = NaN).
    row0 = (c * tiles_per_core + i) * tile_n
    rows = row0 + jax.lax.broadcasted_iota(jnp.int32, (tile_n, 1), 0)
    hv = jnp.where(rows < n_rows, hv, 0.0)

    # One-hot built directly as [b_pad, tile_n]: MXU contracts over the node axis,
    # no transpose anywhere.
    seg = jax.lax.broadcasted_iota(jnp.int32, (b_pad, tile_n), 0)
    onehot = (seg == bid).astype(jnp.bfloat16)           # [b_pad, tile_n]

    # Two-term bf16 split (hi + lo) keeps the segment sums ~f32 accurate while staying
    # on the fast bf16 MXU path; this pass is HBM-bound, so the extra dot is free.
    hi = hv.astype(jnp.bfloat16)
    lo = (hv - hi.astype(jnp.float32)).astype(jnp.bfloat16)
    acc = jnp.dot(onehot, hi, preferred_element_type=jnp.float32)
    acc = acc + jnp.dot(onehot, lo, preferred_element_type=jnp.float32)
    sums_ref[...] += acc[None]


# ---------------------------------------------------------------------------
# Pass 2: gather gate[batch_id] via a one-hot MXU matmul and gate h_V.
# ---------------------------------------------------------------------------
def _apply_gate_kernel(bid_ref, gate_ref, hv_ref, out_ref, *, b_pad):
    bid = bid_ref[...]                                   # [tile_n, 1]
    gate = gate_ref[...]                                 # [b_pad, H] (rows >= B are 0)
    hv = hv_ref[...].astype(jnp.float32)                 # [tile_n, H]
    tile_n = hv.shape[0]

    # One-hot gather on the otherwise-idle MXU keeps this pass memory-bound
    # (no B-way VALU select chain).  Sentinel ids hit the zero-initialized spare row.
    seg = jax.lax.broadcasted_iota(jnp.int32, (tile_n, b_pad), 1)
    onehot = (bid == seg).astype(jnp.float32)            # [tile_n, b_pad]
    gate_nodes = jnp.dot(onehot, gate, preferred_element_type=jnp.float32)
    out_ref[...] = (hv * gate_nodes).astype(out_ref.dtype)


# ---------------------------------------------------------------------------
# Wrapper: pass 1 -> counts + tiny MLP in plain JAX -> pass 2.  No h_V copies.
# ---------------------------------------------------------------------------
def context_forward(h_v, batch_id, w1, b1, w2, b2, num_batches, *,
                    tile_n=None, core_split=None):
    """h_v: [N, H] (f32 or bf16); batch_id: [N] ints in [0, num_batches).
    w1/w2: [H, H] stored [in, out] (transposed vs. torch Linear.weight); b1/b2: [H]."""
    n, h = h_v.shape
    isize = jnp.dtype(h_v.dtype).itemsize
    b_pad = _round_up(num_batches + 1, 8)     # +1 spare zero row = sentinel for padding
    # TODO(synk): for very large num_batches (b_pad in the hundreds+) tile the B axis
    # instead of keeping the full [b_pad, H] gate/sums resident in VMEM.

    if core_split is None:
        core_split = _detect_core_split()

    h_lane = _round_up(h, 128)                # VMEM lane footprint of one feature row

    if tile_n is None:
        # ~2 MiB of h_V per streamed block, capped so the pass-2 working set
        # (in + out + bid column, double buffered) stays inside v7x's scoped VMEM.
        tile_n = (2 << 20) // max(1, h * isize)
        tile_n = min(tile_n, (22 << 20) // (4 * h_lane * 4 + 2 * 128 * 4))
        tile_n = min(tile_n, (4 << 20) // (2 * b_pad))    # bound one-hot build cost
        tile_n = max(256, min(4096, tile_n))
    tile_n = _round_up(tile_n, 128)

    if n <= tile_n:                           # small problem: single tile, single core
        tile_n = _round_up(max(n, 8), 8)
        core_split = 1

    n_tiles = _cdiv(n, tile_n)
    core_split = max(1, min(core_split, n_tiles))
    tiles_per_core = _cdiv(n_tiles, core_split)
    total_tiles = core_split * tiles_per_core
    n_pad = total_tiles * tile_n
    last_blk = n_tiles - 1                    # last in-bounds h_V block index

    # Only batch_id is padded; h_V is streamed unpadded and never copied in the wrapper.
    bid_flat = jnp.full((n_pad,), num_batches, jnp.int32).at[:n].set(
        batch_id.astype(jnp.int32))
    bid_row = bid_flat.reshape(1, n_pad)      # lane-dense layout for pass 1
    bid_col = bid_flat.reshape(n_pad, 1)      # sublane layout for pass 2

    est = (4 * tile_n * h_lane + 2 * tile_n * 128 + 8 * b_pad * h_lane) * 4
    vmem_limit = max(16 << 20, min(30 << 20, int(est * 1.5) + (4 << 20)))

    # ---- pass 1: per-graph (per-core partial) segment sums --------------------------
    sums_parts = pl.pallas_call(
        functools.partial(_segment_sum_kernel, b_pad=b_pad, tile_n=tile_n,
                          tiles_per_core=tiles_per_core, n_rows=n),
        grid=(core_split, tiles_per_core),
        in_specs=[
            pl.BlockSpec((1, tile_n), lambda c, i: (0, c * tiles_per_core + i)),
            # Clamp fully out-of-range tiles (core-split padding) to the last real
            # block; their rows are zero-masked in-kernel anyway.
            pl.BlockSpec((tile_n, h),
                         lambda c, i: (jnp.minimum(c * tiles_per_core + i, last_blk), 0)),
        ],
        out_specs=pl.BlockSpec((1, b_pad, h), lambda c, i: (c, 0, 0)),
        out_shape=jax.ShapeDtypeStruct((core_split, b_pad, h), jnp.float32),
        compiler_params=pltpu.CompilerParams(
            dimension_semantics=("parallel", "arbitrary"),
            vmem_limit_bytes=vmem_limit),
        cost_estimate=pl.CostEstimate(
            flops=4 * n_pad * b_pad * h, transcendentals=0,
            bytes_accessed=n * h * isize + n_pad * 4 + core_split * b_pad * h * 4),
    )(bid_row, h_v)

    # ---- counts, mean and tiny [B, H] MLP: plain JAX (weights never enter kernels) --
    sums = jnp.sum(sums_parts, axis=0)[:num_batches]                       # [B, H]
    counts = jax.ops.segment_sum(jnp.ones((n,), jnp.float32),
                                 batch_id.astype(jnp.int32),
                                 num_segments=num_batches)                 # [B]
    c_v = sums / jnp.maximum(counts, 1.0)[:, None]
    gate = jax.nn.sigmoid(jnp.maximum(c_v @ w1 + b1, 0.0) @ w2 + b2)       # [B, H]
    gate_p = jnp.zeros((b_pad, h), jnp.float32).at[:num_batches].set(gate)

    # ---- pass 2: gather gate per node and gate h_V -----------------------------------
    out = pl.pallas_call(
        functools.partial(_apply_gate_kernel, b_pad=b_pad),
        grid=(n_tiles,),
        in_specs=[
            pl.BlockSpec((tile_n, 1), lambda i: (i, 0)),      # batch_id (tiny)
            pl.BlockSpec((b_pad, h), lambda i: (0, 0)),       # gate (resident)
            pl.BlockSpec((tile_n, h), lambda i: (i, 0)),      # h_V tile
        ],
        out_specs=pl.BlockSpec((tile_n, h), lambda i: (i, 0)),
        out_shape=jax.ShapeDtypeStruct((n, h), h_v.dtype),
        compiler_params=pltpu.CompilerParams(
            dimension_semantics=("parallel",),
            vmem_limit_bytes=vmem_limit),
        cost_estimate=pl.CostEstimate(
            flops=2 * n * b_pad * h + n * h, transcendentals=0,
            bytes_accessed=2 * n * h * isize + n_pad * 4 + b_pad * h * 4),
    )(bid_col, gate_p, h_v)
    return out


# ---------------------------------------------------------------------------
# Pure-JAX reference (f32 PyTorch semantics).
# ---------------------------------------------------------------------------
def _reference(h_v, batch_id, w1, b1, w2, b2, num_batches):
    onehot = jax.nn.one_hot(batch_id, num_batches, dtype=jnp.float32)      # [N, B]
    sums = onehot.T @ h_v.astype(jnp.float32)
    counts = jnp.maximum(onehot.sum(axis=0)[:, None], 1.0)
    c_v = sums / counts
    g = jax.nn.sigmoid(jnp.maximum(c_v @ w1 + b1, 0.0) @ w2 + b2)
    return h_v * g[batch_id]


if __name__ == "__main__":
    key = jax.random.PRNGKey(0)
    k_hv, k_bid, k_w1, k_b1, k_w2, k_b2, k_hv2, k_bid2 = jax.random.split(key, 8)

    # Small shapes consistent with the module: N nodes, H hidden, B graphs.
    N, H, B = 16, 32, 2
    h_v = jax.random.normal(k_hv, (N, H), dtype=jnp.float32)
    batch_id = jnp.sort(jax.random.randint(k_bid, (N,), 0, B, dtype=jnp.int32))

    # Deterministic parameter init for Linear(H, H) x2, weights stored [in, out].
    scale = 1.0 / jnp.sqrt(jnp.float32(H))
    w1 = jax.random.uniform(k_w1, (H, H), jnp.float32, -scale, scale)
    b1 = jax.random.uniform(k_b1, (H,), jnp.float32, -scale, scale)
    w2 = jax.random.uniform(k_w2, (H, H), jnp.float32, -scale, scale)
    b2 = jax.random.uniform(k_b2, (H,), jnp.float32, -scale, scale)

    out = jax.block_until_ready(context_forward(h_v, batch_id, w1, b1, w2, b2, B))
    ref = _reference(h_v, batch_id, w1, b1, w2, b2, B)
    assert out.shape == (N, H)
    assert jnp.allclose(out, ref, atol=1e-3, rtol=1e-3), \
        float(jnp.max(jnp.abs(out - ref)))

    # Multi-tile / ragged-tail / core-split path (still small).
    N2, B2 = 700, 5
    h_v2 = jax.random.normal(k_hv2, (N2, H), dtype=jnp.float32)
    batch_id2 = jax.random.randint(k_bid2, (N2,), 0, B2, dtype=jnp.int32)
    out2 = jax.block_until_ready(
        context_forward(h_v2, batch_id2, w1, b1, w2, b2, B2, tile_n=256, core_split=2))
    ref2 = _reference(h_v2, batch_id2, w1, b1, w2, b2, B2)
    assert jnp.allclose(out2, ref2, atol=1e-3, rtol=1e-3), \
        float(jnp.max(jnp.abs(out2 - ref2)))

    print("KERNEL_OK")
</pallas_src>

<mosaic_0001>
module attributes {stable_mosaic.version = 11 : i64} {
  func.func @_segment_sum_kernel(%arg0: i32, %arg1: i32, %arg2: memref<1x16xi32, #tpu.memory_space<vmem>>, %arg3: memref<16x32xf32, #tpu.memory_space<vmem>>, %arg4: memref<1x8x32xf32, #tpu.memory_space<vmem>>) attributes {dimension_semantics = [#tpu.dimension_semantics<parallel>, #tpu.dimension_semantics<arbitrary>], iteration_bounds = array<i64: 1, 1>, scalar_prefetch = 0 : i64, scratch_operands = 0 : i64, tpu.core_type = #tpu.core_type<tc>, window_params = [{transform_indices = @transform_0, window_bounds = array<i64: 1, 16>}, {transform_indices = @transform_1, window_bounds = array<i64: 16, 32>}, {transform_indices = @transform_2, window_bounds = array<i64: 1, 8, 32>}]} {
    %c0_i32 = arith.constant 0 : i32
    %0 = arith.cmpi eq, %arg1, %c0_i32 : i32
    %1 = arith.extui %0 : i1 to i32
    %c0_i32_0 = arith.constant 0 : i32
    %2 = arith.cmpi ne, %1, %c0_i32_0 : i32
    scf.if %2 {
      %cst_13 = arith.constant 0.000000e+00 : f32
      %34 = vector.broadcast %cst_13 : f32 to vector<1x8x32xf32>
      %c0_14 = arith.constant 0 : index
      %c0_15 = arith.constant 0 : index
      %c0_16 = arith.constant 0 : index
      %35 = vector.load %arg4[%c0_14, %c0_15, %c0_16] : memref<1x8x32xf32, #tpu.memory_space<vmem>>, vector<1x8x32xf32>
      tpu.vector_store %arg4[%c0_14, %c0_15, %c0_16], %34 {strides = array<i32>} : memref<1x8x32xf32, #tpu.memory_space<vmem>>, vector<1x8x32xf32>,
    } else {
    }
    %c0 = arith.constant 0 : index
    %c0_1 = arith.constant 0 : index
    %3 = vector.load %arg3[%c0, %c0_1] : memref<16x32xf32, #tpu.memory_space<vmem>>, vector<16x32xf32>
    %c0_2 = arith.constant 0 : index
    %c0_3 = arith.constant 0 : index
    %4 = vector.load %arg2[%c0_2, %c0_3] : memref<1x16xi32, #tpu.memory_space<vmem>>, vector<1x16xi32>
    %c1_i32 = arith.constant 1 : i32
    %5 = arith.muli %arg0, %c1_i32 : i32
    %6 = arith.addi %5, %arg1 : i32
    %c16_i32 = arith.constant 16 : i32
    %7 = arith.muli %6, %c16_i32 : i32
    %8 = tpu.iota {dimensions = array<i32: 0>} : vector<16x1xi32>
    %9 = vector.broadcast %7 : i32 to vector<16x1xi32>
    %10 = arith.addi %9, %8 : vector<16x1xi32>
    %c16_i32_4 = arith.constant 16 : i32
    %11 = vector.broadcast %c16_i32_4 : i32 to vector<16x1xi32>
    %12 = arith.cmpi slt, %10, %11 : vector<16x1xi32>
    %cst = arith.constant 0.000000e+00 : f32
    %13 = vector.shape_cast %12 : vector<16x1xi1> to vector<16x1xi1>
    %14 = vector.broadcast %13 : vector<16x1xi1> to vector<16x32xi1>
    %15 = vector.broadcast %cst : f32 to vector<16x32xf32>
    %16 = arith.select %14, %3, %15 : vector<16x32xi1>, vector<16x32xf32>
    %17 = tpu.iota {dimensions = array<i32: 0>} : vector<8x16xi32>
    %18 = vector.broadcast %4 : vector<1x16xi32> to vector<8x16xi32>
    %19 = arith.cmpi eq, %17, %18 : vector<8x16xi32>
    %20 = arith.extui %19 : vector<8x16xi1> to vector<8x16xi32>
    %21 = arith.sitofp %20 : vector<8x16xi32> to vector<8x16xf32>
    %22 = arith.truncf %21 : vector<8x16xf32> to vector<8x16xbf16>
    %23 = arith.truncf %16 : vector<16x32xf32> to vector<16x32xbf16>
    %24 = arith.extf %23 : vector<16x32xbf16> to vector<16x32xf32>
    %25 = arith.subf %16, %24 : vector<16x32xf32>
    %26 = arith.truncf %25 : vector<16x32xf32> to vector<16x32xbf16>
    %cst_5 = arith.constant dense<0.000000e+00> : vector<8x32xf32>
    %27 = tpu.matmul %22, %23, %cst_5 {dimension_numbers = #tpu.dot_dimension_numbers<[1], [0], [0], [1], [0, 0, 1, 1], [], []>} : vector<8x16xbf16>, vector<16x32xbf16>, vector<8x32xf32> -> vector<8x32xf32>
    %cst_6 = arith.constant dense<0.000000e+00> : vector<8x32xf32>
    %28 = tpu.matmul %22, %26, %cst_6 {dimension_numbers = #tpu.dot_dimension_numbers<[1], [0], [0], [1], [0, 0, 1, 1], [], []>} : vector<8x16xbf16>, vector<16x32xbf16>, vector<8x32xf32> -> vector<8x32xf32>
    %29 = arith.addf %27, %28 : vector<8x32xf32>
    %c0_7 = arith.constant 0 : index
    %c0_8 = arith.constant 0 : index
    %c0_9 = arith.constant 0 : index
    %30 = vector.load %arg4[%c0_7, %c0_8, %c0_9] : memref<1x8x32xf32, #tpu.memory_space<vmem>>, vector<1x8x32xf32>
    %31 = vector.shape_cast %29 : vector<8x32xf32> to vector<1x8x32xf32>
    %32 = arith.addf %30, %31 : vector<1x8x32xf32>
    %c0_10 = arith.constant 0 : index
    %c0_11 = arith.constant 0 : index
    %c0_12 = arith.constant 0 : index
    %33 = vector.load %arg4[%c0_10, %c0_11, %c0_12] : memref<1x8x32xf32, #tpu.memory_space<vmem>>, vector<1x8x32xf32>
    tpu.vector_store %arg4[%c0_10, %c0_11, %c0_12], %32 {strides = array<i32>} : memref<1x8x32xf32, #tpu.memory_space<vmem>>, vector<1x8x32xf32>,
    return
  }
  func.func @transform_0(%arg0: i32, %arg1: i32) -> (i32, i32) {
    %c1_i32 = arith.constant 1 : i32
    %0 = arith.muli %arg0, %c1_i32 : i32
    %1 = arith.addi %0, %arg1 : i32
    %c0_i32 = arith.constant 0 : i32
    %c0_i32_0 = arith.constant 0 : i32
    return %c0_i32, %1 : i32, i32
  }
  func.func @transform_1(%arg0: i32, %arg1: i32) -> (i32, i32) {
    %c1_i32 = arith.constant 1 : i32
    %0 = arith.muli %arg0, %c1_i32 : i32
    %1 = arith.addi %0, %arg1 : i32
    %c0_i32 = arith.constant 0 : i32
    %2 = arith.minsi %1, %c0_i32 : i32
    %c0_i32_0 = arith.constant 0 : i32
    %c0_i32_1 = arith.constant 0 : i32
    return %2, %c0_i32_0 : i32, i32
  }
  func.func @transform_2(%arg0: i32, %arg1: i32) -> (i32, i32, i32) {
    %c0_i32 = arith.constant 0 : i32
    %c0_i32_0 = arith.constant 0 : i32
    %c0_i32_1 = arith.constant 0 : i32
    return %arg0, %c0_i32, %c0_i32_0 : i32, i32, i32
  }
}

</mosaic_0001>

<llo_original>
// kernel: tpu_custom_call.1
$region0: #{tpu_custom_call.1}
  #allocation0 [shape = 'u32[]', space=smem, size = 0x4, offset = 0x4, fixed_abs, tag = 'smem constant byte address 0x4 - core index']
  #allocation1 [shape = 'u32[72,128]{1,0:T(1,128)}', space=vmem, size = 0x9000, scoped, tag = 'internal scratch']
  %s0 = inlined_call_operand.hbm [shape: s32[1,16], index: 0, kind: input, shape index: {}]
  %s1 = inlined_call_operand.hbm [shape: f32[16,32], index: 1, kind: input, shape index: {}]
  %s2 = inlined_call_operand.hbm [shape: f32[1,8,32], index: 2, kind: output, shape index: {}]
  %s3 = sld [smem:[#allocation0]]
  $region30: #{tpu_custom_call.1} parent=0
    _
  %s5 = ssub.s32 1, %s3
  %s6 = scalar_select 0, %s5, %s3
  $region1: #{tpu_custom_call.1} parent=0
    #allocation2 [shape = 'u8[512]{0}', space=vmem, size = 0x400, scoped, tag = 'input window, operand 0, single buffered']
    #allocation3 [shape = 's32[1]{0}', space=sflag, size = 0x4, scoped, tag = 'scoped memory for tpu_custom_call.1']
    #allocation4 [shape = 's32[1]{0}', space=sflag, size = 0x4, scoped, tag = 'scoped memory for tpu_custom_call.1']
    #allocation5 [shape = 'u8[8192]{0}', space=vmem, size = 0x2000, scoped, tag = 'input window, operand 1, single buffered']
    #allocation6 [shape = 's32[1]{0}', space=sflag, size = 0x4, scoped, tag = 'scoped memory for tpu_custom_call.1']
    #allocation7 [shape = 'u8[4096]{0}', space=vmem, size = 0x1000, scoped, tag = 'output window, operand 0, single buffered']
    %7 = vsyncpa [#allocation3], 0
    %8 = vsyncpa [#allocation6], 0
    %9 = vsyncpa [#allocation4], 0
    // Predicated region
    $region2: #{tpu_custom_call.1} parent=1 // pred_check
      _
    $region3: #{tpu_custom_call.1} parent=1 // pred_check_branch
      %11 = sbr.rel (0) target = $region5
    $region4: #{tpu_custom_call.1} parent=1 // pred_region
      %s12 = sadd.s32 0, 0
      %14 = vsyncadd [#allocation3], 0
      %s15 = scalar_lea.hbm %s0, %s12
      %s17 = sshll.u32 %s15, 4
      %s18 = int_to_ptr.hbm [resolvable:$true] %s17
      %s19 = sshll.u32 [#allocation2], 4
      %s20 = int_to_ptr.vmem [resolvable:$true] %s19
      %22 = dma.hbm_to_vmem [thread:$0]  %s18, 16, %s20, [#allocation3]
    $region5: #{tpu_custom_call.1} parent=1 // pred_fallthru
      _
    // Predicated region
    $region6: #{tpu_custom_call.1} parent=1 // pred_check
      _
    $region7: #{tpu_custom_call.1} parent=1 // pred_check_branch
      %24 = sbr.rel (0) target = $region9
    $region8: #{tpu_custom_call.1} parent=1 // pred_region
      %s25 = sadd.s32 0, 0
      %p26 = scmp.lt.s32.totalorder %s25, 0
      %s27 = scalar_select %p26, %s25, 0
      %s28 = smul.u32 2, %s27
      %30 = vsyncadd [#allocation6], 0
      %s31 = smul.addr %s28, 8
      %s32 = scalar_lea.hbm %s1, %s31
      %s33 = sshll.u32 %s32, 4
      %s34 = int_to_ptr.hbm [resolvable:$true] %s33
      %s35 = sshll.u32 [#allocation5], 4
      %s36 = int_to_ptr.vmem [resolvable:$true] %s35
      %41 = dma.hbm_to_vmem [thread:$0]  %s34, 256, %s36, [#allocation6], 128, 128, 8
    $region9: #{tpu_custom_call.1} parent=1 // pred_fallthru
      _
    // Predicated region
    $region10: #{tpu_custom_call.1} parent=1 // pred_check
      _
    $region11: #{tpu_custom_call.1} parent=1 // pred_check_branch
      %43 = sbr.rel (0) target = $region13
    $region12: #{tpu_custom_call.1} parent=1 // pred_region
      %45 = dma.done [#allocation3], 16
    $region13: #{tpu_custom_call.1} parent=1 // pred_fallthru
      _
    // Predicated region
    $region14: #{tpu_custom_call.1} parent=1 // pred_check
      _
    $region15: #{tpu_custom_call.1} parent=1 // pred_check_branch
      %47 = sbr.rel (0) target = $region17
    $region16: #{tpu_custom_call.1} parent=1 // pred_region
      %49 = dma.done [#allocation6], 256
    $region17: #{tpu_custom_call.1} parent=1 // pred_fallthru
      _
    %s50 = sadd.s32 0, 0
    %s51 = sadd.s32 0, 0
    %p52 = scmp.lt.s32.totalorder %s51, 0
    %s53 = scalar_select %p52, %s51, 0
    %s54 = smul.u32 2, %s53
    %p56 = scmp.eq.s32.totalorder 0, 0
    // Predicated region
    $region18: #{tpu_custom_call.1} parent=1 // pred_check
      %p57 = pneg %p56
    $region19: #{tpu_custom_call.1} parent=1 // pred_check_branch
      %59 = sbr.rel (%p57) target = $region21
    $region20: #{tpu_custom_call.1} parent=1 // pred_region
      %vm60 = vcmask 261120
      %61 = vst.msk [vmem:[#allocation7] sm:$0xff] %vm60, 0.0
    $region21: #{tpu_custom_call.1} parent=1 // pred_fallthru
      _
    %v62 = vld [vmem:[#allocation5] sm:$0xff]
    %v63 = vld [vmem:[#allocation5 + $0x8] sm:$0xff]
    %v64 = vld [vmem:[#allocation2] sm:$0x1]
    %s65 = sadd.s32 0, 0
    %s66 = smul.u32 %s65, 16
    %v67 = vlaneseq
    %v68 = vshrl.u32 %v67, 7
    %v69 = vadd.s32 %v68, 8
    %v70 = vstv %s66
    %v71 = vadd.s32 %v70, %v68
    %v72 = vadd.s32 %v70, %v69
    %vm73 = vcmp.lt.s32.totalorder %v71, 16
    %vm74 = vcmp.lt.s32.totalorder %v72, 16
    %v75 = vsel %vm73, 1, 0
    %v76 = vsel %vm74, 1, 0
    %vm77 = vcmp.eq.s32.totalorder %v75, 1
    %vm78 = vcmp.eq.s32.totalorder %v76, 1
    %v79 = vsel %vm77, %v62, 0.0
    %v80 = vsel %vm78, %v63, 0.0
    %v81 = vperm.slane %v64, 0
    %vm82 = vcmp.eq.s32.totalorder %v68, %v81
    %v83 = vsel %vm82, 1, 0
    %v84 = vcvt.s32.f32 %v83
    %v85 = vpack.c.bf16 %v84, %v84
    %v86 = vpack.c.bf16 %v79, %v79
    %v87 = vpack.c.bf16 %v80, %v80
    %v88 = vunpack.c.l.bf16 %v86
    %v89 = vunpack.c.l.bf16 %v87
    %v90 = vsub.f32 %v79, %v88
    %v91 = vsub.f32 %v80, %v89
    %v92 = vpack.c.bf16 %v91, %v90
    %vm93 = vcmask 130048
    %v95 = vsel %vm93, %v85, 0
    %97 = vmatpush.bf16.msra.mxu0 0
    %98 = vmatpush.bf16.msra.mxu0 0
    %99 = vmatpush.bf16.msra.mxu0 0
    %100 = vmatpush.bf16.msra.mxu0 0
    %101 = vmatpush.bf16.msra.mxu0 0
    %102 = vmatpush.bf16.msra.mxu0 0
    %103 = vmatpush.bf16.msra.mxu0 0
    %104 = vmatpush.bf16.msra.mxu0 %v92
    %105 = vmatmul.bf16.gmra.mxu0 %v95
    %v106 = vpop.f32.mrf.mxu0
    %v107 = vadd.f32 0.0, %v106
    %v108 = vpop.f32.mrf.mxu0
    %109 = vdwg.mxu0
    %v112 = vunpack.c.l.b16 %v86
    %v113 = vunpack.c.l.b16 %v87
    %v114 = vpack.c.b16 %v113, %v112
    %116 = vmatpush.bf16.msra.mxu0 0
    %117 = vmatpush.bf16.msra.mxu0 0
    %118 = vmatpush.bf16.msra.mxu0 0
    %119 = vmatpush.bf16.msra.mxu0 0
    %120 = vmatpush.bf16.msra.mxu0 0
    %121 = vmatpush.bf16.msra.mxu0 0
    %122 = vmatpush.bf16.msra.mxu0 0
    %123 = vmatpush.bf16.msra.mxu0 %v114
    %124 = vmatmul.bf16.gmra.mxu0 %v95
    %v125 = vpop.f32.mrf.mxu0
    %v126 = vadd.f32 %v107, %v125
    %v127 = vpop.f32.mrf.mxu0
    %128 = vdwg.mxu0
    %v129 = vld [vmem:[#allocation7] sm:$0xff]
    %v130 = vadd.f32 %v129, %v126
    %vm131 = vcmask 261120
    %132 = vst.msk [vmem:[#allocation7] sm:$0xff] %vm131, %v130
    // Predicated region
    $region22: #{tpu_custom_call.1} parent=1 // pred_check
      _
    $region23: #{tpu_custom_call.1} parent=1 // pred_check_branch
      %134 = sbr.rel (0) target = $region25
    $region24: #{tpu_custom_call.1} parent=1 // pred_region
      %136 = vsyncadd [#allocation4], 0
      %s138 = sshll.u32 [#allocation7], 4
      %s139 = int_to_ptr.vmem [resolvable:$true] %s138
      %s140 = sshll.u32 %s2, 4
      %s141 = int_to_ptr.hbm [resolvable:$true] %s140
      %143 = dma.vmem_to_hbm [thread:$0]  %s139, 128, %s141, [#allocation4]
    $region25: #{tpu_custom_call.1} parent=1 // pred_fallthru
      _
    // Predicated region
    $region26: #{tpu_custom_call.1} parent=1 // pred_check
      _
    $region27: #{tpu_custom_call.1} parent=1 // pred_check_branch
      %145 = sbr.rel (0) target = $region29
    $region28: #{tpu_custom_call.1} parent=1 // pred_region
      %147 = dma.done [#allocation4], 128
    $region29: #{tpu_custom_call.1} parent=1 // pred_fallthru
      _
    %148 = vsyncpa [#allocation3], 1
    %149 = vsyncpa [#allocation6], 1
    %150 = vsyncpa [#allocation4], 1

</llo_original>
